<compile_context>
chip_gen: v7x
topology: tpu7x:2x2x1
jax: 0.10.0
libtpu: 0.0.40
codegen_flags: <defaults>
</compile_context>

<pallas_src>
import jax
import jax.numpy as jnp
from jax import lax
from jax.experimental import pallas as pl
from jax.experimental.pallas import tpu as pltpu


# ----------------------------------------------------------------------------
# Kernel 1: distances (proxy) + running argmin over P tiles
# ----------------------------------------------------------------------------
def vq_argmin_kernel(x_ref, cbnT_ref, mask_ref, idx_ref, minval_ref, minidx_ref):
    # x_ref:      (TB, D)   batch tile (raw, un-normalized — argmin-invariant)
    # cbnT_ref:   (D, TP)   -(normalized codebook)^T tile  (sign pre-folded)
    # mask_ref:   (1, TP)   0 for real codebook columns, +inf for padding
    # idx_ref:    (TB, 1)   int32 output (written on the last P step)
    # minval_ref: (TB, 1)   running min distance proxy (scratch)
    # minidx_ref: (TB, 1)   running argmin (scratch)
    k = pl.program_id(1)
    tp = cbnT_ref.shape[1]

    @pl.when(k == 0)
    def _init():
        minval_ref[...] = jnp.full(minval_ref.shape, jnp.inf, minval_ref.dtype)
        minidx_ref[...] = jnp.zeros(minidx_ref.shape, minidx_ref.dtype)

    # distance proxy: d_j = -(x . wn_j) + mask_j   (argmin-equivalent to the
    # true ||xn||^2 + ||wn_j||^2 - 2 xn.wn_j because the dropped terms are
    # per-row constants / positive per-row scales)
    x = x_ref[...].astype(cbnT_ref.dtype)
    d = jnp.dot(x, cbnT_ref[...], preferred_element_type=jnp.float32)
    d = d + mask_ref[...]                                     # (TB, TP)

    # local argmin within this P tile (first-index tie-break)
    col = lax.broadcasted_iota(jnp.int32, (1, tp), 1)         # (1, TP)
    local_min = jnp.min(d, axis=1, keepdims=True)             # (TB, 1)
    local_idx = jnp.min(jnp.where(d <= local_min, col, tp),
                        axis=1, keepdims=True)                # (TB, 1) int32
    local_idx = local_idx + k * tp                            # global index

    # running update; strict '<' keeps the earliest tile on exact ties,
    # matching torch.argmin's first-index tie-break globally
    better = local_min < minval_ref[...]
    minidx_ref[...] = jnp.where(better, local_idx, minidx_ref[...])
    minval_ref[...] = jnp.where(better, local_min, minval_ref[...])

    @pl.when(k == pl.num_programs(1) - 1)
    def _finalize():
        idx_ref[...] = minidx_ref[...]


# ----------------------------------------------------------------------------
# Kernel 2: gather RAW codebook rows by index (scalar-prefetched index_map)
# ----------------------------------------------------------------------------
def vq_gather_kernel(idx_ref, row_ref, q_ref):
    # idx_ref: (N,) int32 in SMEM (scalar prefetch, consumed by the index_map)
    # row_ref: (1, 1, D) raw codebook row selected by the index_map
    # q_ref:   (1, 1, D) output row
    del idx_ref
    q_ref[...] = row_ref[...]


# ----------------------------------------------------------------------------
# One-time parameter prep (constant per forward call — hoisted out of kernels)
# ----------------------------------------------------------------------------
def prepare_codebook(weight, dist_dtype=jnp.float32, tp=512):
    """dist_dtype=jnp.bfloat16 speeds up the distance matmul on v6e/v7x at a
    small near-tie index-flip risk vs the f32 reference (kept f32 by default)."""
    P, D = weight.shape
    P_pad = ((P + tp - 1) // tp) * tp
    w = weight.astype(jnp.float32)
    norms = jnp.sqrt(jnp.sum(w * w, axis=1, keepdims=True))
    wn = w / jnp.maximum(norms, 1e-12)                         # F.normalize
    # fold the (monotone) -1 sign into the codebook; pad columns are zero and
    # killed by the +inf mask below
    cbn_T_neg = jnp.zeros((D, P_pad), dist_dtype)
    cbn_T_neg = cbn_T_neg.at[:, :P].set((-wn.T).astype(dist_dtype))
    mask = jnp.where(jnp.arange(P_pad) < P, 0.0, jnp.inf)
    mask = mask.astype(jnp.float32).reshape(1, P_pad)
    return dict(
        weight_rows=w.reshape(P, 1, D),    # raw rows, (P, 1, D) for the gather
        cbn_T_neg=cbn_T_neg,               # (D, P_pad), streamed in TP tiles
        mask=mask,                         # (1, P_pad)
        P=P, D=D, TP=tp,
    )


# ----------------------------------------------------------------------------
# Wrappers
# ----------------------------------------------------------------------------
def vq_argmin(x, cb, tb=256):
    N, D = x.shape
    TP = cb["TP"]
    P_pad = cb["cbn_T_neg"].shape[1]

    # sublane-aligned batch tile; 256 amortizes codebook streaming (512 is
    # also fine on v5e/v6e if VMEM allows)
    TB = tb if N > tb else max(8, ((N + 7) // 8) * 8)
    N_pad = ((N + TB - 1) // TB) * TB
    x_pad = x if N_pad == N else jnp.zeros((N_pad, D), x.dtype).at[:N].set(x)

    idx_pad = pl.pallas_call(
        vq_argmin_kernel,
        out_shape=jax.ShapeDtypeStruct((N_pad, 1), jnp.int32),
        grid=(N_pad // TB, P_pad // TP),
        in_specs=[
            pl.BlockSpec((TB, D), lambda i, k: (i, 0)),    # x tile (held over k)
            pl.BlockSpec((D, TP), lambda i, k: (0, k)),    # -(wn)^T tile
            pl.BlockSpec((1, TP), lambda i, k: (0, k)),    # pad mask tile
        ],
        out_specs=pl.BlockSpec((TB, 1), lambda i, k: (i, 0)),
        scratch_shapes=[pltpu.VMEM((TB, 1), jnp.float32),
                        pltpu.VMEM((TB, 1), jnp.int32)],
        compiler_params=pltpu.CompilerParams(
            dimension_semantics=("parallel", "arbitrary"),
            vmem_limit_bytes=48 * 1024 * 1024),
    )(x_pad, cb["cbn_T_neg"], cb["mask"])
    return idx_pad[:N, 0]


def vq_gather(cb, idx):
    N = idx.shape[0]
    weight_rows = cb["weight_rows"]                    # (P, 1, D)
    _, _, D = weight_rows.shape
    q3 = pl.pallas_call(
        vq_gather_kernel,
        out_shape=jax.ShapeDtypeStruct((N, 1, D), weight_rows.dtype),
        grid_spec=pltpu.PrefetchScalarGridSpec(
            num_scalar_prefetch=1,
            grid=(N,),
            in_specs=[pl.BlockSpec((1, 1, D),
                                   lambda i, idx_ref: (idx_ref[i], 0, 0))],
            out_specs=pl.BlockSpec((1, 1, D),
                                   lambda i, idx_ref: (i, 0, 0)),
        ),
        compiler_params=pltpu.CompilerParams(
            dimension_semantics=("arbitrary",)),
    )(idx, weight_rows)
    return q3.reshape(N, D)


def vector_quantizer_forward(x, cb):
    """Eval-mode forward: returns (quantized, encoding_indices)."""
    idx = vq_argmin(x, cb)
    quantized = vq_gather(cb, idx)
    return quantized, idx


if __name__ == "__main__":
    key = jax.random.PRNGKey(0)
    k_w, k_x = jax.random.split(key)

    # Small shapes consistent with the module (defaults 10000x2048 are too big
    # for a smoke test): batch=6, embedding_dim=128, num_embeddings=500.
    batch, embedding_dim, num_embeddings = 6, 128, 500

    # nn.Embedding weight with torch.nn.init.uniform_(w, 0, 3)
    weight = jax.random.uniform(k_w, (num_embeddings, embedding_dim),
                                jnp.float32, minval=0.0, maxval=3.0)
    x = jax.random.normal(k_x, (batch, embedding_dim), jnp.float32)

    cb = prepare_codebook(weight)
    quantized, indices = vector_quantizer_forward(x, cb)
    jax.block_until_ready((quantized, indices))

    # pure-JAX reference (same math as the PyTorch eval forward)
    xn = x / jnp.maximum(jnp.linalg.norm(x, axis=1, keepdims=True), 1e-12)
    wn = weight / jnp.maximum(jnp.linalg.norm(weight, axis=1, keepdims=True), 1e-12)
    d_ref = (jnp.sum(xn * xn, axis=1, keepdims=True)
             + jnp.sum(wn * wn, axis=1) - 2.0 * (xn @ wn.T))
    ref_idx = jnp.argmin(d_ref, axis=1)
    ref_q = weight[ref_idx]

    assert quantized.shape == (batch, embedding_dim)
    assert indices.shape == (batch,) and indices.dtype == jnp.int32
    assert bool(jnp.all(indices == ref_idx.astype(jnp.int32)))
    assert bool(jnp.allclose(quantized, ref_q, atol=1e-5, rtol=1e-5))
    print("KERNEL_OK")
</pallas_src>

<mosaic_0001>
module attributes {stable_mosaic.version = 11 : i64} {
  func.func @vq_argmin_kernel(%arg0: i32, %arg1: i32, %arg2: memref<8x128xf32, #tpu.memory_space<vmem>>, %arg3: memref<128x512xf32, #tpu.memory_space<vmem>>, %arg4: memref<1x512xf32, #tpu.memory_space<vmem>>, %arg5: memref<8x1xi32, #tpu.memory_space<vmem>>, %arg6: memref<8x1xf32, #tpu.memory_space<vmem>>, %arg7: memref<8x1xi32, #tpu.memory_space<vmem>>) attributes {dimension_semantics = [#tpu.dimension_semantics<parallel>, #tpu.dimension_semantics<arbitrary>], iteration_bounds = array<i64: 1, 1>, scalar_prefetch = 0 : i64, scratch_operands = 2 : i64, tpu.core_type = #tpu.core_type<tc>, window_params = [{transform_indices = @transform_0, window_bounds = array<i64: 8, 128>}, {transform_indices = @transform_1, window_bounds = array<i64: 128, 512>}, {transform_indices = @transform_2, window_bounds = array<i64: 1, 512>}, {transform_indices = @transform_3, window_bounds = array<i64: 8, 1>}]} {
    %c0_i32 = arith.constant 0 : i32
    %0 = arith.cmpi eq, %arg1, %c0_i32 : i32
    %1 = arith.extui %0 : i1 to i32
    %c0_i32_0 = arith.constant 0 : i32
    %2 = arith.cmpi ne, %1, %c0_i32_0 : i32
    scf.if %2 {
      %cst_21 = arith.constant 0x7F800000 : f32
      %34 = vector.broadcast %cst_21 : f32 to vector<8x1xf32>
      %c0_22 = arith.constant 0 : index
      %c0_23 = arith.constant 0 : index
      %35 = vector.load %arg6[%c0_22, %c0_23] : memref<8x1xf32, #tpu.memory_space<vmem>>, vector<8x1xf32>
      tpu.vector_store %arg6[%c0_22, %c0_23], %34 {strides = array<i32>} : memref<8x1xf32, #tpu.memory_space<vmem>>, vector<8x1xf32>,
      %c0_i32_24 = arith.constant 0 : i32
      %36 = vector.broadcast %c0_i32_24 : i32 to vector<8x1xi32>
      %c0_25 = arith.constant 0 : index
      %c0_26 = arith.constant 0 : index
      %37 = vector.load %arg7[%c0_25, %c0_26] : memref<8x1xi32, #tpu.memory_space<vmem>>, vector<8x1xi32>
      tpu.vector_store %arg7[%c0_25, %c0_26], %36 {strides = array<i32>} : memref<8x1xi32, #tpu.memory_space<vmem>>, vector<8x1xi32>,
    } else {
    }
    %c0 = arith.constant 0 : index
    %c0_1 = arith.constant 0 : index
    %3 = vector.load %arg2[%c0, %c0_1] : memref<8x128xf32, #tpu.memory_space<vmem>>, vector<8x128xf32>
    %c0_2 = arith.constant 0 : index
    %c0_3 = arith.constant 0 : index
    %4 = vector.load %arg3[%c0_2, %c0_3] : memref<128x512xf32, #tpu.memory_space<vmem>>, vector<128x512xf32>
    %cst = arith.constant dense<0.000000e+00> : vector<8x512xf32>
    %5 = tpu.matmul %3, %4, %cst {dimension_numbers = #tpu.dot_dimension_numbers<[1], [0], [0], [1], [0, 0, 1, 1], [], []>} : vector<8x128xf32>, vector<128x512xf32>, vector<8x512xf32> -> vector<8x512xf32>
    %c0_4 = arith.constant 0 : index
    %c0_5 = arith.constant 0 : index
    %6 = vector.load %arg4[%c0_4, %c0_5] : memref<1x512xf32, #tpu.memory_space<vmem>>, vector<1x512xf32>
    %7 = vector.broadcast %6 : vector<1x512xf32> to vector<8x512xf32>
    %8 = arith.addf %5, %7 : vector<8x512xf32>
    %9 = tpu.iota {dimensions = array<i32: 1>} : vector<1x512xi32>
    %cst_6 = arith.constant dense<0x7F800000> : vector<8xf32>
    %10 = vector.multi_reduction <minimumf>, %8, %cst_6 [1] : vector<8x512xf32> to vector<8xf32>
    %11 = vector.shape_cast %10 : vector<8xf32> to vector<8x1xf32>
    %12 = vector.broadcast %11 : vector<8x1xf32> to vector<8x512xf32>
    %13 = arith.cmpf ole, %8, %12 : vector<8x512xf32>
    %c512_i32 = arith.constant 512 : i32
    %14 = vector.shape_cast %9 : vector<1x512xi32> to vector<1x512xi32>
    %15 = vector.broadcast %14 : vector<1x512xi32> to vector<8x512xi32>
    %16 = vector.broadcast %c512_i32 : i32 to vector<8x512xi32>
    %17 = arith.select %13, %15, %16 : vector<8x512xi1>, vector<8x512xi32>
    %cst_7 = arith.constant dense<2147483647> : vector<8xi32>
    %18 = vector.multi_reduction <minsi>, %17, %cst_7 [1] : vector<8x512xi32> to vector<8xi32>
    %19 = vector.shape_cast %18 : vector<8xi32> to vector<8x1xi32>
    %c512_i32_8 = arith.constant 512 : i32
    %20 = arith.muli %arg1, %c512_i32_8 : i32
    %21 = vector.broadcast %20 : i32 to vector<8x1xi32>
    %22 = arith.addi %19, %21 : vector<8x1xi32>
    %c0_9 = arith.constant 0 : index
    %c0_10 = arith.constant 0 : index
    %23 = vector.load %arg6[%c0_9, %c0_10] : memref<8x1xf32, #tpu.memory_space<vmem>>, vector<8x1xf32>
    %24 = arith.cmpf olt, %11, %23 : vector<8x1xf32>
    %c0_11 = arith.constant 0 : index
    %c0_12 = arith.constant 0 : index
    %25 = vector.load %arg7[%c0_11, %c0_12] : memref<8x1xi32, #tpu.memory_space<vmem>>, vector<8x1xi32>
    %26 = arith.select %24, %22, %25 : vector<8x1xi1>, vector<8x1xi32>
    %c0_13 = arith.constant 0 : index
    %c0_14 = arith.constant 0 : index
    %27 = vector.load %arg7[%c0_13, %c0_14] : memref<8x1xi32, #tpu.memory_space<vmem>>, vector<8x1xi32>
    tpu.vector_store %arg7[%c0_13, %c0_14], %26 {strides = array<i32>} : memref<8x1xi32, #tpu.memory_space<vmem>>, vector<8x1xi32>,
    %c0_15 = arith.constant 0 : index
    %c0_16 = arith.constant 0 : index
    %28 = vector.load %arg6[%c0_15, %c0_16] : memref<8x1xf32, #tpu.memory_space<vmem>>, vector<8x1xf32>
    %29 = arith.select %24, %11, %28 : vector<8x1xi1>, vector<8x1xf32>
    %c0_17 = arith.constant 0 : index
    %c0_18 = arith.constant 0 : index
    %30 = vector.load %arg6[%c0_17, %c0_18] : memref<8x1xf32, #tpu.memory_space<vmem>>, vector<8x1xf32>
    tpu.vector_store %arg6[%c0_17, %c0_18], %29 {strides = array<i32>} : memref<8x1xf32, #tpu.memory_space<vmem>>, vector<8x1xf32>,
    %c0_i32_19 = arith.constant 0 : i32
    %31 = arith.cmpi eq, %arg1, %c0_i32_19 : i32
    %32 = arith.extui %31 : i1 to i32
    %c0_i32_20 = arith.constant 0 : i32
    %33 = arith.cmpi ne, %32, %c0_i32_20 : i32
    scf.if %33 {
      %c0_21 = arith.constant 0 : index
      %c0_22 = arith.constant 0 : index
      %34 = vector.load %arg7[%c0_21, %c0_22] : memref<8x1xi32, #tpu.memory_space<vmem>>, vector<8x1xi32>
      %c0_23 = arith.constant 0 : index
      %c0_24 = arith.constant 0 : index
      %35 = vector.load %arg5[%c0_23, %c0_24] : memref<8x1xi32, #tpu.memory_space<vmem>>, vector<8x1xi32>
      tpu.vector_store %arg5[%c0_23, %c0_24], %34 {strides = array<i32>} : memref<8x1xi32, #tpu.memory_space<vmem>>, vector<8x1xi32>,
    } else {
    }
    return
  }
  func.func @transform_0(%arg0: i32, %arg1: i32) -> (i32, i32) {
    %c0_i32 = arith.constant 0 : i32
    %c0_i32_0 = arith.constant 0 : i32
    return %arg0, %c0_i32 : i32, i32
  }
  func.func @transform_1(%arg0: i32, %arg1: i32) -> (i32, i32) {
    %c0_i32 = arith.constant 0 : i32
    %c0_i32_0 = arith.constant 0 : i32
    return %c0_i32, %arg1 : i32, i32
  }
  func.func @transform_2(%arg0: i32, %arg1: i32) -> (i32, i32) {
    %c0_i32 = arith.constant 0 : i32
    %c0_i32_0 = arith.constant 0 : i32
    return %c0_i32, %arg1 : i32, i32
  }
  func.func @transform_3(%arg0: i32, %arg1: i32) -> (i32, i32) {
    %c0_i32 = arith.constant 0 : i32
    %c0_i32_0 = arith.constant 0 : i32
    return %arg0, %c0_i32 : i32, i32
  }
}

</mosaic_0001>

<llo_original>
// kernel: tpu_custom_call.1
$region0: #{tpu_custom_call.1}
  #allocation0 [shape = 'u32[]', space=smem, size = 0x4, offset = 0x4, fixed_abs, tag = 'smem constant byte address 0x4 - core index']
  #allocation1 [shape = 'u32[144,128]{1,0:T(1,128)}', space=vmem, size = 0x12000, scoped, tag = 'internal scratch']
  #allocation2 [shape = 'f32[8,1]{1,0:T(8,128)}', space=vmem, size = 0x1000, scoped, tag = 'scratch operand']
  #allocation3 [shape = 's32[8,1]{1,0:T(8,128)}', space=vmem, size = 0x1000, scoped, tag = 'scratch operand']
  %s0 = inlined_call_operand.hbm [shape: f32[8,128], index: 0, kind: input, shape index: {}]
  %s1 = inlined_call_operand.hbm [shape: f32[128,512], index: 1, kind: input, shape index: {}]
  %s2 = inlined_call_operand.vmem [shape: f32[1,512], index: 2, kind: input, shape index: {}]
  %s3 = inlined_call_operand.vmem [shape: s32[8,1], index: 3, kind: output, shape index: {}]
  %s4 = sld [smem:[#allocation0]]
  $region38: #{tpu_custom_call.1} parent=0
    _
  %s6 = ssub.s32 1, %s4
  %s7 = scalar_select 0, %s6, %s4
  $region1: #{tpu_custom_call.1} parent=0
    #allocation4 [shape = 'u8[4096]{0}', space=vmem, size = 0x1000, scoped, tag = 'input window, operand 0, single buffered']
    #allocation5 [shape = 's32[1]{0}', space=sflag, size = 0x4, scoped, tag = 'scoped memory for tpu_custom_call.1']
    #allocation6 [shape = 'u8[262144]{0}', space=vmem, size = 0x40000, scoped, tag = 'input window, operand 1, single buffered']
    #allocation7 [shape = 's32[1]{0}', space=sflag, size = 0x4, scoped, tag = 'scoped memory for tpu_custom_call.1']
    %8 = vsyncpa [#allocation5], 0
    %9 = vsyncpa [#allocation7], 0
    // Predicated region
    $region2: #{tpu_custom_call.1} parent=1 // pred_check
      _
    $region3: #{tpu_custom_call.1} parent=1 // pred_check_branch
      %11 = sbr.rel (0) target = $region5
    $region4: #{tpu_custom_call.1} parent=1 // pred_region
      %s13 = ssub.s32 128, 128
      %14 = vsyncadd [#allocation5], %s13
      %s16 = sshll.u32 [#allocation4], 4
      %s17 = int_to_ptr.vmem [resolvable:$true] %s16
      %19 = dma.hbm_to_vmem [thread:$0]  %s0, 128, %s17, [#allocation5]
    $region5: #{tpu_custom_call.1} parent=1 // pred_fallthru
      _
    // Predicated region
    $region6: #{tpu_custom_call.1} parent=1 // pred_check
      _
    $region7: #{tpu_custom_call.1} parent=1 // pred_check_branch
      %21 = sbr.rel (0) target = $region9
    $region8: #{tpu_custom_call.1} parent=1 // pred_region
      %s23 = ssub.s32 8192, 8192
      %24 = vsyncadd [#allocation7], %s23
      %s25 = sshll.u32 [#allocation6], 4
      %s26 = int_to_ptr.vmem [resolvable:$true] %s25
      %31 = dma.hbm_to_vmem [thread:$0]  %s1, 8192, %s26, [#allocation7], 512, 512, 32
    $region9: #{tpu_custom_call.1} parent=1 // pred_fallthru
      _
    // Predicated region
    $region10: #{tpu_custom_call.1} parent=1 // pred_check
      _
    $region11: #{tpu_custom_call.1} parent=1 // pred_check_branch
      %33 = sbr.rel (0) target = $region13
    $region12: #{tpu_custom_call.1} parent=1 // pred_region
      _
    $region13: #{tpu_custom_call.1} parent=1 // pred_fallthru
      _
    // Predicated region
    $region14: #{tpu_custom_call.1} parent=1 // pred_check
      _
    $region15: #{tpu_custom_call.1} parent=1 // pred_check_branch
      %35 = sbr.rel (0) target = $region17
    $region16: #{tpu_custom_call.1} parent=1 // pred_region
      %36 = dma.done [#allocation5], 128
    $region17: #{tpu_custom_call.1} parent=1 // pred_fallthru
      _
    // Predicated region
    $region18: #{tpu_custom_call.1} parent=1 // pred_check
      _
    $region19: #{tpu_custom_call.1} parent=1 // pred_check_branch
      %38 = sbr.rel (0) target = $region21
    $region20: #{tpu_custom_call.1} parent=1 // pred_region
      %39 = dma.done [#allocation7], 8192
    $region21: #{tpu_custom_call.1} parent=1 // pred_fallthru
      _
    %p40 = scmp.eq.s32.totalorder 0, 0
    // Predicated region
    $region22: #{tpu_custom_call.1} parent=1 // pred_check
      %p41 = pneg %p40
    $region23: #{tpu_custom_call.1} parent=1 // pred_check_branch
      %43 = sbr.rel (%p41) target = $region25
    $region24: #{tpu_custom_call.1} parent=1 // pred_region
      %vm44 = vcmask 7168
      %45 = vst.msk [vmem:[#allocation2] sm:$0xff] %vm44, inf
      %46 = vst.msk [vmem:[#allocation3] sm:$0xff] %vm44, 0
    $region25: #{tpu_custom_call.1} parent=1 // pred_fallthru
      _
    %v47 = vld [vmem:[#allocation4] sm:$0xff]
    %v48 = vld [vmem:[#allocation6] sm:$0xff]
    %v49 = vld [vmem:[#allocation6 + $0x8] sm:$0xff]
    %v50 = vld [vmem:[#allocation6 + $0x10] sm:$0xff]
    %v51 = vld [vmem:[#allocation6 + $0x18] sm:$0xff]
    %v52 = vld [vmem:[#allocation6 + $0x20] sm:$0xff]
    %v53 = vld [vmem:[#allocation6 + $0x28] sm:$0xff]
    %v54 = vld [vmem:[#allocation6 + $0x30] sm:$0xff]
    %v55 = vld [vmem:[#allocation6 + $0x38] sm:$0xff]
    %v56 = vld [vmem:[#allocation6 + $0x40] sm:$0xff]
    %v57 = vld [vmem:[#allocation6 + $0x48] sm:$0xff]
    %v58 = vld [vmem:[#allocation6 + $0x50] sm:$0xff]
    %v59 = vld [vmem:[#allocation6 + $0x58] sm:$0xff]
    %v60 = vld [vmem:[#allocation6 + $0x60] sm:$0xff]
    %v61 = vld [vmem:[#allocation6 + $0x68] sm:$0xff]
    %v62 = vld [vmem:[#allocation6 + $0x70] sm:$0xff]
    %v63 = vld [vmem:[#allocation6 + $0x78] sm:$0xff]
    %v64 = vld [vmem:[#allocation6 + $0x80] sm:$0xff]
    %v65 = vld [vmem:[#allocation6 + $0x88] sm:$0xff]
    %v66 = vld [vmem:[#allocation6 + $0x90] sm:$0xff]
    %v67 = vld [vmem:[#allocation6 + $0x98] sm:$0xff]
    %v68 = vld [vmem:[#allocation6 + $0xa0] sm:$0xff]
    %v69 = vld [vmem:[#allocation6 + $0xa8] sm:$0xff]
    %v70 = vld [vmem:[#allocation6 + $0xb0] sm:$0xff]
    %v71 = vld [vmem:[#allocation6 + $0xb8] sm:$0xff]
    %v72 = vld [vmem:[#allocation6 + $0xc0] sm:$0xff]
    %v73 = vld [vmem:[#allocation6 + $0xc8] sm:$0xff]
    %v74 = vld [vmem:[#allocation6 + $0xd0] sm:$0xff]
    %v75 = vld [vmem:[#allocation6 + $0xd8] sm:$0xff]
    %v76 = vld [vmem:[#allocation6 + $0xe0] sm:$0xff]
    %v77 = vld [vmem:[#allocation6 + $0xe8] sm:$0xff]
    %v78 = vld [vmem:[#allocation6 + $0xf0] sm:$0xff]
    %v79 = vld [vmem:[#allocation6 + $0xf8] sm:$0xff]
    %v80 = vld [vmem:[#allocation6 + $0x100] sm:$0xff]
    %v81 = vld [vmem:[#allocation6 + $0x108] sm:$0xff]
    %v82 = vld [vmem:[#allocation6 + $0x110] sm:$0xff]
    %v83 = vld [vmem:[#allocation6 + $0x118] sm:$0xff]
    %v84 = vld [vmem:[#allocation6 + $0x120] sm:$0xff]
    %v85 = vld [vmem:[#allocation6 + $0x128] sm:$0xff]
    %v86 = vld [vmem:[#allocation6 + $0x130] sm:$0xff]
    %v87 = vld [vmem:[#allocation6 + $0x138] sm:$0xff]
    %v88 = vld [vmem:[#allocation6 + $0x140] sm:$0xff]
    %v89 = vld [vmem:[#allocation6 + $0x148] sm:$0xff]
    %v90 = vld [vmem:[#allocation6 + $0x150] sm:$0xff]
    %v91 = vld [vmem:[#allocation6 + $0x158] sm:$0xff]
    %v92 = vld [vmem:[#allocation6 + $0x160] sm:$0xff]
    %v93 = vld [vmem:[#allocation6 + $0x168] sm:$0xff]
    %v94 = vld [vmem:[#allocation6 + $0x170] sm:$0xff]
    %v95 = vld [vmem:[#allocation6 + $0x178] sm:$0xff]
    %v96 = vld [vmem:[#allocation6 + $0x180] sm:$0xff]
    %v97 = vld [vmem:[#allocation6 + $0x188] sm:$0xff]
    %v98 = vld [vmem:[#allocation6 + $0x190] sm:$0xff]
    %v99 = vld [vmem:[#allocation6 + $0x198] sm:$0xff]
    %v100 = vld [vmem:[#allocation6 + $0x1a0] sm:$0xff]
    %v101 = vld [vmem:[#allocation6 + $0x1a8] sm:$0xff]
    %v102 = vld [vmem:[#allocation6 + $0x1b0] sm:$0xff]
    %v103 = vld [vmem:[#allocation6 + $0x1b8] sm:$0xff]
    %v104 = vld [vmem:[#allocation6 + $0x1c0] sm:$0xff]
    %v105 = vld [vmem:[#allocation6 + $0x1c8] sm:$0xff]
    %v106 = vld [vmem:[#allocation6 + $0x1d0] sm:$0xff]
    %v107 = vld [vmem:[#allocation6 + $0x1d8] sm:$0xff]
    %v108 = vld [vmem:[#allocation6 + $0x1e0] sm:$0xff]
    %v109 = vld [vmem:[#allocation6 + $0x1e8] sm:$0xff]
    %v110 = vld [vmem:[#allocation6 + $0x1f0] sm:$0xff]
    %v111 = vld [vmem:[#allocation6 + $0x1f8] sm:$0xff]
    %v112 = vld [vmem:[%s2] sm:$0xf]
    %v114 = vlaneseq
    %v115 = vshrl.u32 %v114, 7
    %v116 = vsub.s32 0, %v115
    %v117 = vrot.slane %v112, %v116
    %v118 = vlaneseq
    %v119 = vshrl.u32 %v118, 7
    %v120 = vsub.s32 1, %v119
    %v121 = vrot.slane %v112, %v120
    %v122 = vlaneseq
    %v123 = vshrl.u32 %v122, 7
    %v124 = vsub.s32 2, %v123
    %v125 = vrot.slane %v112, %v124
    %v126 = vlaneseq
    %v127 = vshrl.u32 %v126, 7
    %v128 = vsub.s32 3, %v127
    %v129 = vrot.slane %v112, %v128
    %134 = vmatprep.subr.mxu0 %v49
    %135 = vmatpush1.msra.mxu0 %v48
    %136 = vmatprep.subr.mxu0 %v53
    %137 = vmatpush1.msra.mxu0 %v52
    %138 = vmatprep.subr.mxu0 %v57
    %139 = vmatpush1.msra.mxu0 %v56
    %140 = vmatprep.subr.mxu0 %v61
    %141 = vmatpush1.msra.mxu0 %v60
    %142 = vmatprep.subr.mxu0 %v65
    %143 = vmatpush1.msra.mxu0 %v64
    %144 = vmatprep.subr.mxu0 %v69
    %145 = vmatpush1.msra.mxu0 %v68
    %146 = vmatprep.subr.mxu0 %v73
    %147 = vmatpush1.msra.mxu0 %v72
    %148 = vmatprep.subr.mxu0 %v77
    %149 = vmatpush1.msra.mxu0 %v76
    %150 = vmatprep.subr.mxu0 %v81
    %151 = vmatpush1.msra.mxu0 %v80
    %152 = vmatprep.subr.mxu0 %v85
    %153 = vmatpush1.msra.mxu0 %v84
    %154 = vmatprep.subr.mxu0 %v89
    %155 = vmatpush1.msra.mxu0 %v88
    %156 = vmatprep.subr.mxu0 %v93
    %157 = vmatpush1.msra.mxu0 %v92
    %158 = vmatprep.subr.mxu0 %v97
    %159 = vmatpush1.msra.mxu0 %v96
    %160 = vmatprep.subr.mxu0 %v101
    %161 = vmatpush1.msra.mxu0 %v100
    %162 = vmatprep.subr.mxu0 %v105
    %163 = vmatpush1.msra.mxu0 %v104
    %164 = vmatprep.subr.mxu0 %v109
    %165 = vmatpush1.msra.mxu0 %v108
    %166 = vmatprep.subr.mxu0 0.0
    %167 = vmatpush1.msra.mxu0 0.0
    %168 = vmatprep.subr.mxu0 0.0
    %169 = vmatpush1.msra.mxu0 0.0
    %170 = vmatprep.subr.mxu0 0.0
    %171 = vmatpush1.msra.mxu0 0.0
    %172 = vmatprep.subr.mxu0 0.0
    %173 = vmatpush1.msra.mxu0 0.0
    %174 = vmatprep.subr.mxu0 0.0
    %175 = vmatpush1.msra.mxu0 0.0
    %176 = vmatprep.subr.mxu0 0.0
    %177 = vmatpush1.msra.mxu0 0.0
    %178 = vmatprep.subr.mxu0 0.0
    %179 = vmatpush1.msra.mxu0 0.0
    %180 = vmatprep.subr.mxu0 0.0
    %181 = vmatpush1.msra.mxu0 0.0
    %182 = vmatprep.subr.mxu0 0.0
    %183 = vmatpush1.msra.mxu0 0.0
    %184 = vmatprep.subr.mxu0 0.0
    %185 = vmatpush1.msra.mxu0 0.0
    %186 = vmatprep.subr.mxu0 0.0
    %187 = vmatpush1.msra.mxu0 0.0
    %188 = vmatprep.subr.mxu0 0.0
    %189 = vmatpush1.msra.mxu0 0.0
    %190 = vmatprep.subr.mxu0 0.0
    %191 = vmatpush1.msra.mxu0 0.0
    %192 = vmatprep.subr.mxu0 0.0
    %193 = vmatpush1.msra.mxu0 0.0
    %194 = vmatprep.subr.mxu0 0.0
    %195 = vmatpush1.msra.mxu0 0.0
    %196 = vmatprep.subr.mxu0 0.0
    %197 = vmatpush1.msra.mxu0 0.0
    %198 = vmatprep.mubr.f32.mxu0 0.0
    %199 = vmatmul.mubr.f32.gmra.mrb[0].mxu0 %v47
    %v200 = vpop.f32.mrb[0].mxu0
    %v201 = vadd.f32 %v117, %v200
    %v202 = vpop.f32.mrb[0].mxu0
    %v203 = vadd.f32 %v121, %v202
    %204 = vdwg.mxu0
    %205 = vmatprep.subr.mxu0 %v51
    %206 = vmatpush1.msra.mxu0 %v50
    %207 = vmatprep.subr.mxu0 %v55
    %208 = vmatpush1.msra.mxu0 %v54
    %209 = vmatprep.subr.mxu0 %v59
    %210 = vmatpush1.msra.mxu0 %v58
    %211 = vmatprep.subr.mxu0 %v63
    %212 = vmatpush1.msra.mxu0 %v62
    %213 = vmatprep.subr.mxu0 %v67
    %214 = vmatpush1.msra.mxu0 %v66
    %215 = vmatprep.subr.mxu0 %v71
    %216 = vmatpush1.msra.mxu0 %v70
    %217 = vmatprep.subr.mxu0 %v75
    %218 = vmatpush1.msra.mxu0 %v74
    %219 = vmatprep.subr.mxu0 %v79
    %220 = vmatpush1.msra.mxu0 %v78
    %221 = vmatprep.subr.mxu0 %v83
    %222 = vmatpush1.msra.mxu0 %v82
    %223 = vmatprep.subr.mxu0 %v87
    %224 = vmatpush1.msra.mxu0 %v86
    %225 = vmatprep.subr.mxu0 %v91
    %226 = vmatpush1.msra.mxu0 %v90
    %227 = vmatprep.subr.mxu0 %v95
    %228 = vmatpush1.msra.mxu0 %v94
    %229 = vmatprep.subr.mxu0 %v99
    %230 = vmatpush1.msra.mxu0 %v98
    %231 = vmatprep.subr.mxu0 %v103
    %232 = vmatpush1.msra.mxu0 %v102
    %233 = vmatprep.subr.mxu0 %v107
    %234 = vmatpush1.msra.mxu0 %v106
    %235 = vmatprep.subr.mxu0 %v111
    %236 = vmatpush1.msra.mxu0 %v110
    %237 = vmatprep.subr.mxu0 0.0
    %238 = vmatpush1.msra.mxu0 0.0
    %239 = vmatprep.subr.mxu0 0.0
    %240 = vmatpush1.msra.mxu0 0.0
    %241 = vmatprep.subr.mxu0 0.0
    %242 = vmatpush1.msra.mxu0 0.0
    %243 = vmatprep.subr.mxu0 0.0
    %244 = vmatpush1.msra.mxu0 0.0
    %245 = vmatprep.subr.mxu0 0.0
    %246 = vmatpush1.msra.mxu0 0.0
    %247 = vmatprep.subr.mxu0 0.0
    %248 = vmatpush1.msra.mxu0 0.0
    %249 = vmatprep.subr.mxu0 0.0
    %250 = vmatpush1.msra.mxu0 0.0
    %251 = vmatprep.subr.mxu0 0.0
    %252 = vmatpush1.msra.mxu0 0.0
    %253 = vmatprep.subr.mxu0 0.0
    %254 = vmatpush1.msra.mxu0 0.0
    %255 = vmatprep.subr.mxu0 0.0
    %256 = vmatpush1.msra.mxu0 0.0
    %257 = vmatprep.subr.mxu0 0.0
    %258 = vmatpush1.msra.mxu0 0.0
    %259 = vmatprep.subr.mxu0 0.0
    %260 = vmatpush1.msra.mxu0 0.0
    %261 = vmatprep.subr.mxu0 0.0
    %262 = vmatpush1.msra.mxu0 0.0
    %263 = vmatprep.subr.mxu0 0.0
    %264 = vmatpush1.msra.mxu0 0.0
    %265 = vmatprep.subr.mxu0 0.0
    %266 = vmatpush1.msra.mxu0 0.0
    %267 = vmatprep.subr.mxu0 0.0
    %268 = vmatpush1.msra.mxu0 0.0
    %269 = vmatprep.mubr.f32.mxu0 0.0
    %270 = vmatmul.mubr.f32.gmra.mrb[0].mxu0 %v47
    %v271 = vpop.f32.mrb[0].mxu0
    %v272 = vadd.f32 %v125, %v271
    %v273 = vpop.f32.mrb[0].mxu0
    %v274 = vadd.f32 %v129, %v273
    %275 = vdwg.mxu0
    %v276 = vlaneseq
    %v277 = vand.u32 %v276, 127
    %v278 = vadd.s32 %v277, 128
    %v279 = vadd.s32 %v277, 256
    %v280 = vadd.s32 %v277, 384
    %v281 = vmin.f32 %v201, %v203
    %v282 = vmin.f32 %v272, %v274
    %v283 = vmin.f32 %v281, %v282
    %284 = vmin.xlane.f32.xlu0 %v283
    %v285 = vpop.xlane.xlu0 %284
    %vm286 = vcmp.le.f32.partialorder %v201, %v285
    %vm287 = vcmp.le.f32.partialorder %v203, %v285
    %vm288 = vcmp.le.f32.partialorder %v272, %v285
    %vm289 = vcmp.le.f32.partialorder %v274, %v285
    %v290 = vsel %vm286, %v277, 512
    %v291 = vsel %vm287, %v278, 512
    %v292 = vsel %vm288, %v279, 512
    %v293 = vsel %vm289, %v280, 512
    %vm294 = vcmp.lt.s32.totalorder %v290, %v291
    %v295 = vsel %vm294, %v290, %v291
    %vm296 = vcmp.lt.s32.totalorder %v292, %v293
    %v297 = vsel %vm296, %v292, %v293
    %vm298 = vcmp.lt.s32.totalorder %v295, %v297
    %v299 = vsel %vm298, %v295, %v297
    %v300 = vand.u32 %v299, 65535
    %v301 = vshra.s32 %v299, 16
    %v302 = vcvt.s32.f32 %v300
    %v303 = vcvt.s32.f32 %v301
    %304 = vmin.xlane.f32.xlu0 %v303
    %v305 = vpop.xlane.xlu0 %304
    %vm306 = vcmp.eq.f32.partialorder %v303, %v305
    %v307 = vsel %vm306, %v302, inf
    %308 = vmin.xlane.f32.xlu0 %v307
    %v309 = vpop.xlane.xlu0 %308
    %v310 = vcvt.f32.s32 %v309
    %v311 = vcvt.f32.s32 %v305
    %v312 = vshll.u32 %v311, 16
    %v313 = vadd.s32 %v312, %v310
    %s314 = smul.u32 0, 512
    %v315 = vstv %s314
    %v316 = vadd.s32 %v313, %v315
    %v317 = vld [vmem:[#allocation2] sm:$0xff]
    %vm318 = vcmp.lt.f32.partialorder %v285, %v317
    %v319 = vld [vmem:[#allocation3] sm:$0xff]
    %v320 = vsel %vm318, %v316, %v319
    %vm321 = vcmask 7168
    %322 = vst.msk [vmem:[#allocation3] sm:$0xff] %vm321, %v320
    %v323 = vld [vmem:[#allocation2] sm:$0xff]
    %v324 = vsel %vm318, %v285, %v323
    %325 = vst.msk [vmem:[#allocation2] sm:$0xff] %vm321, %v324
    // Predicated region
    $region26: #{tpu_custom_call.1} parent=1 // pred_check
      %p326 = pneg %p40
    $region27: #{tpu_custom_call.1} parent=1 // pred_check_branch
      %328 = sbr.rel (%p326) target = $region29
    $region28: #{tpu_custom_call.1} parent=1 // pred_region
      %v329 = vld [vmem:[#allocation3] sm:$0xff]
      %330 = vst.msk [vmem:[%s3] sm:$0xff] %vm321, %v329
    $region29: #{tpu_custom_call.1} parent=1 // pred_fallthru
      _
    // Predicated region
    $region30: #{tpu_custom_call.1} parent=1 // pred_check
      _
    $region31: #{tpu_custom_call.1} parent=1 // pred_check_branch
      %332 = sbr.rel (0) target = $region33
    $region32: #{tpu_custom_call.1} parent=1 // pred_region
      _
    $region33: #{tpu_custom_call.1} parent=1 // pred_fallthru
      _
    // Predicated region
    $region34: #{tpu_custom_call.1} parent=1 // pred_check
      _
    $region35: #{tpu_custom_call.1} parent=1 // pred_check_branch
      %334 = sbr.rel (0) target = $region37
    $region36: #{tpu_custom_call.1} parent=1 // pred_region
      _
    $region37: #{tpu_custom_call.1} parent=1 // pred_fallthru
      _
    %335 = vsyncpa [#allocation5], 1
    %336 = vsyncpa [#allocation7], 1

</llo_original>
